<compile_context>
chip_gen: v5e
topology: v5e:2x2
jax: 0.10.0
libtpu: 0.0.40
codegen_flags: <defaults>
</compile_context>

<pallas_src>
import math
from typing import NamedTuple

import jax
import jax.numpy as jnp
from jax import lax
from jax.experimental import pallas as pl
from jax.experimental.pallas import tpu as pltpu

_NEG_PAD = -1e30  # bias fill for padded output lanes -> exp() == 0, no NaN/Inf


# ---------------------------------------------------------------------------
# Kernels
# ---------------------------------------------------------------------------
def _fused_kernel(x_ref, w_ref, b_ref, o_ref):
    """Resident-weight path: one full (tile_b, units_p) row per grid step."""
    # x: (TB, IN) native dtype -> bf16 on the VPU; w: (IN, UNITS_P) bf16 in
    # canonical (K, N) orientation -> no in-kernel transpose; f32 MXU accumulate.
    z = lax.dot_general(
        x_ref[...].astype(jnp.bfloat16), w_ref[...],
        dimension_numbers=(((1,), (0,)), ((), ())),
        preferred_element_type=jnp.float32,
    ) + b_ref[...]                                       # (TB, UNITS_P) f32

    # Fused, numerically stable log-softmax: two full-size elementwise passes
    # (exp(z - m) reduce, then the z - d store) instead of three; no 'shifted'
    # temporary kept live across the reduction.
    m = jnp.max(z, axis=-1, keepdims=True)
    l = jnp.sum(jnp.exp(z - m), axis=-1, keepdims=True)
    d = m + jnp.log(l)
    o_ref[...] = (z - d).astype(o_ref.dtype)


def _tiled_kernel(x_ref, w_ref, b_ref, o_ref, z_ref, m_ref, l_ref):
    """N-tiled path: flash-style online running max / logsumexp over units."""
    j = pl.program_id(1)

    @pl.when(j == 0)
    def _init():
        m_ref[...] = jnp.full_like(m_ref, -jnp.inf)
        l_ref[...] = jnp.zeros_like(l_ref)

    zb = lax.dot_general(
        x_ref[...].astype(jnp.bfloat16), w_ref[...],
        dimension_numbers=(((1,), (0,)), ((), ())),
        preferred_element_type=jnp.float32,
    ) + b_ref[...]                                       # (TB, TN) f32

    m_prev = m_ref[...]
    m_new = jnp.maximum(m_prev, jnp.max(zb, axis=-1, keepdims=True))
    l_ref[...] = (l_ref[...] * jnp.exp(m_prev - m_new)
                  + jnp.sum(jnp.exp(zb - m_new), axis=-1, keepdims=True))
    m_ref[...] = m_new

    tn = zb.shape[-1]                                    # multiple of 128
    col0 = pl.multiple_of(j * tn, 128)
    z_ref[:, pl.ds(col0, tn)] = zb                       # stash raw f32 logits

    @pl.when(j == pl.num_programs(1) - 1)
    def _finalize():
        d = m_ref[...] + jnp.log(l_ref[...])
        o_ref[...] = (z_ref[...] - d).astype(o_ref.dtype)


# ---------------------------------------------------------------------------
# Planning (generation-aware VMEM budget, batch / N tiling)
# ---------------------------------------------------------------------------
class _Plan(NamedTuple):
    tile_b: int
    tile_n: int
    units_p: int
    B_p: int
    grid_b: int
    grid_n: int
    vmem_limit: int


def _vmem_capacity_bytes():
    try:
        cap = getattr(pltpu.get_tpu_info(), "vmem_capacity_bytes", None)
        if cap:
            return int(cap)
    except Exception:
        pass
    return 64 << 20  # conservative default (v7x); v5e/v6e have 128 MiB


def _plan(B, in_features, units, x_isz, out_isz, tile_b_req, force_tile_n=None):
    cap = _vmem_capacity_bytes()
    budget = int(0.65 * cap)            # resident-data target; keep pipeline headroom

    # Batch tile granularity depends on the narrowest dtype touching VMEM rows.
    gran = max(8, 32 // min(x_isz, out_isz))

    # Batch tile: keep >=2 grid steps when the batch is big enough so the
    # 'parallel' axis actually shards across v7x's two TensorCores and the
    # x/out double-buffer has something to pipeline.
    tb = min(int(tile_b_req), gran * pl.cdiv(B, gran))
    tb = max(gran, gran * (tb // gran))
    if B > 128 and pl.cdiv(B, tb) < 2:
        tb = max(gran, gran * pl.cdiv(pl.cdiv(B, 2), gran))

    units_p0 = 128 * pl.cdiv(units, 128)

    def _resident_need(tb_, up_):
        return (2 * tb_ * in_features * x_isz       # x blocks, double-buffered
                + 2 * in_features * up_ * 2         # weight (bf16), conservative x2
                + 2 * up_ * 4                       # bias
                + 2 * tb_ * up_ * out_isz           # out blocks
                + 2 * tb_ * up_ * 4)                # f32 temporaries headroom

    def _tiled_need(tb_, tn_, up_):
        return (2 * tb_ * in_features * x_isz
                + 2 * in_features * tn_ * 2         # streamed weight blocks (bf16)
                + 2 * tn_ * 4                       # bias blocks
                + 2 * tb_ * up_ * out_isz           # out blocks
                + tb_ * up_ * 4                     # f32 raw-logits row scratch
                + 2 * tb_ * tn_ * 4                 # per-block f32 temporaries
                + 4 * tb_ * 4)                      # m / l scratch

    if force_tile_n is not None:
        tn = max(128, 128 * pl.cdiv(int(force_tile_n), 128))
        tn = min(tn, units_p0)
    elif _resident_need(tb, units_p0) <= budget:
        tn = units_p0                               # whole weight stays resident
    else:
        tn = units_p0
        while tn > 128 and _tiled_need(tb, tn, units_p0) > budget:
            tn = max(128, 128 * ((tn // 2) // 128))
        while tb > gran and _tiled_need(tb, tn, units_p0) > budget:
            tb = max(gran, gran * ((tb // 2) // gran))
        # TODO(synk): for vocab-head sized units where even one (tile_b, units_p)
        # f32 row exceeds VMEM, switch to a two-pass scheme (stats pass +
        # subtract pass, or an HBM logits scratch).

    units_p = tn * pl.cdiv(units, tn)
    grid_n = units_p // tn
    B_p = tb * pl.cdiv(B, tb)
    grid_b = B_p // tb

    need = _resident_need(tb, units_p) if grid_n == 1 else _tiled_need(tb, tn, units_p)
    # Generation-aware VMEM limit: ~75% of physical capacity (~96 MiB on
    # v5e/v6e's 128 MiB, ~48 MiB on v7x's 64 MiB), clamped to what we need.
    vmem_limit = int(min(0.75 * cap, max(1.5 * need + (2 << 20), 32 << 20)))
    return _Plan(tb, tn, units_p, B_p, grid_b, grid_n, vmem_limit)


# ---------------------------------------------------------------------------
# pallas_call builders
# ---------------------------------------------------------------------------
def _call_fused(x_p, w_kn, b_row, plan, out_dtype, cost):
    tb, units_p, B_p = plan.tile_b, plan.units_p, plan.B_p
    in_features = x_p.shape[1]

    def build(single_buffer_consts):
        if single_buffer_consts:
            # Constant-index weight/bias blocks don't need double-buffering:
            # halves their resident VMEM footprint.
            w_spec = pl.BlockSpec((in_features, units_p), lambda i: (0, 0),
                                  pipeline_mode=pl.Buffered(1))
            b_spec = pl.BlockSpec((1, units_p), lambda i: (0, 0),
                                  pipeline_mode=pl.Buffered(1))
        else:
            w_spec = pl.BlockSpec((in_features, units_p), lambda i: (0, 0))
            b_spec = pl.BlockSpec((1, units_p), lambda i: (0, 0))
        return pl.pallas_call(
            _fused_kernel,
            out_shape=jax.ShapeDtypeStruct((B_p, units_p), out_dtype),
            grid_spec=pltpu.PrefetchScalarGridSpec(
                num_scalar_prefetch=0,
                grid=(plan.grid_b,),
                in_specs=[pl.BlockSpec((tb, in_features), lambda i: (i, 0)),
                          w_spec, b_spec],
                out_specs=pl.BlockSpec((tb, units_p), lambda i: (i, 0)),
            ),
            compiler_params=pltpu.CompilerParams(
                dimension_semantics=("parallel",),
                vmem_limit_bytes=plan.vmem_limit),
            cost_estimate=cost,
        )

    try:
        return build(True)(x_p, w_kn, b_row)
    except Exception:
        # pl.Buffered(1) single-buffering of constant blocks is best-effort;
        # fall back to the default double-buffered pipeline.
        return build(False)(x_p, w_kn, b_row)


def _call_tiled(x_p, w_kn, b_row, plan, out_dtype, cost):
    tb, tn, units_p, B_p = plan.tile_b, plan.tile_n, plan.units_p, plan.B_p
    in_features = x_p.shape[1]
    return pl.pallas_call(
        _tiled_kernel,
        out_shape=jax.ShapeDtypeStruct((B_p, units_p), out_dtype),
        grid_spec=pltpu.PrefetchScalarGridSpec(
            num_scalar_prefetch=0,
            grid=(plan.grid_b, plan.grid_n),
            in_specs=[
                pl.BlockSpec((tb, in_features), lambda i, j: (i, 0)),
                pl.BlockSpec((in_features, tn), lambda i, j: (0, j)),
                pl.BlockSpec((1, tn), lambda i, j: (0, j)),
            ],
            out_specs=pl.BlockSpec((tb, units_p), lambda i, j: (i, 0)),
            scratch_shapes=[
                pltpu.VMEM((tb, units_p), jnp.float32),   # raw-logits row
                pltpu.VMEM((tb, 1), jnp.float32),         # running max
                pltpu.VMEM((tb, 1), jnp.float32),         # running sum-exp
            ],
        ),
        compiler_params=pltpu.CompilerParams(
            dimension_semantics=("parallel", "arbitrary"),
            vmem_limit_bytes=plan.vmem_limit),
        cost_estimate=cost,
    )(x_p, w_kn, b_row)


# ---------------------------------------------------------------------------
# Public wrapper: LogSoftmax(Linear(x))
# ---------------------------------------------------------------------------
def linear_logsoftmax(x, weight, bias, *, tile_b=256, force_tile_n=None):
    """x: (B, in_features) | weight: (units, in_features) | bias: (units,)."""
    B, in_features = x.shape
    units = weight.shape[0]
    out_dtype = x.dtype
    x_isz = jnp.dtype(x.dtype).itemsize
    out_isz = jnp.dtype(out_dtype).itemsize

    plan = _plan(B, in_features, units, x_isz, out_isz, tile_b, force_tile_n)
    units_p, B_p = plan.units_p, plan.B_p

    # ---- parameter prep (in a real model do this ONCE at init, not per call) --
    # Canonical MXU (K, N) orientation, bf16 operands; padded output lanes get
    # bias = -1e30 so they never win the row max / contribute to the logsumexp.
    w_kn = weight.astype(jnp.bfloat16).T            # (in_features, units)
    b_row = bias.astype(jnp.float32)
    if units_p != units:
        w_kn = jnp.pad(w_kn, ((0, 0), (0, units_p - units)))
        b_row = jnp.pad(b_row, (0, units_p - units), constant_values=_NEG_PAD)
    b_row = b_row.reshape(1, units_p)

    # x stays in its native dtype (no extra HBM cast pass); kernel casts to bf16.
    x_p = x if B_p == B else jnp.pad(x, ((0, B_p - B), (0, 0)))

    w_reads = 1 if plan.grid_n == 1 else plan.grid_b
    cost = pl.CostEstimate(
        flops=2 * B_p * in_features * units_p,
        transcendentals=B_p * units_p + B_p,
        bytes_accessed=(x_p.size * x_isz
                        + (w_kn.size * 2 + b_row.size * 4) * w_reads
                        + B_p * units_p * out_isz),
    )

    if plan.grid_n == 1:
        out = _call_fused(x_p, w_kn, b_row, plan, out_dtype, cost)
    else:
        out = _call_tiled(x_p, w_kn, b_row, plan, out_dtype, cost)
    return out[:B, :units]                           # strip batch / lane padding


# ---------------------------------------------------------------------------
# Reference / init helpers + self-test
# ---------------------------------------------------------------------------
def xavier_uniform(key, shape, dtype=jnp.float32):
    fan_out, fan_in = shape                          # nn.Linear weight layout
    limit = math.sqrt(6.0 / (fan_in + fan_out))
    return jax.random.uniform(key, shape, dtype, minval=-limit, maxval=limit)


def _reference(x, weight, bias):
    # Same bf16 operand rounding as the kernel, f32 accumulate.
    return jax.nn.log_softmax(
        jnp.dot(x.astype(jnp.bfloat16).astype(jnp.float32),
                weight.astype(jnp.bfloat16).astype(jnp.float32).T,
                precision=lax.Precision.HIGHEST) + bias,
        axis=-1)


if __name__ == "__main__":
    key = jax.random.PRNGKey(0)
    k_x, k_w, k_b, k_x2, k_w2, k_b2 = jax.random.split(key, 6)

    # --- test 1: module-spec shapes -> resident-weight (fused) path -----------
    in_features, units, batch = 32, 16, 8
    x = jax.random.normal(k_x, (batch, in_features), dtype=jnp.float32)
    weight = xavier_uniform(k_w, (units, in_features))            # xavier_uniform_
    bound = 1.0 / math.sqrt(in_features)                          # default bias init
    bias = jax.random.uniform(k_b, (units,), jnp.float32, minval=-bound, maxval=bound)

    out = jax.block_until_ready(linear_logsoftmax(x, weight, bias))
    assert out.shape == (batch, units)
    assert not bool(jnp.any(jnp.isnan(out)))
    assert jnp.allclose(out, _reference(x, weight, bias), atol=2e-3, rtol=2e-3)
    assert jnp.allclose(out, jax.nn.log_softmax(x @ weight.T + bias, axis=-1),
                        atol=3e-2, rtol=3e-2)

    # --- test 2: force the N-tiled online-logsumexp path (grid 3x3) -----------
    in_features2, units2, batch2 = 64, 300, 40
    x2 = jax.random.normal(k_x2, (batch2, in_features2), dtype=jnp.float32)
    w2 = xavier_uniform(k_w2, (units2, in_features2))
    bound2 = 1.0 / math.sqrt(in_features2)
    b2 = jax.random.uniform(k_b2, (units2,), jnp.float32, minval=-bound2, maxval=bound2)

    out2 = jax.block_until_ready(
        linear_logsoftmax(x2, w2, b2, tile_b=16, force_tile_n=128))
    assert out2.shape == (batch2, units2)
    assert not bool(jnp.any(jnp.isnan(out2)))
    assert jnp.allclose(out2, _reference(x2, w2, b2), atol=2e-3, rtol=2e-3)

    print("KERNEL_OK")
</pallas_src>

<mosaic_0001>
module attributes {stable_mosaic.version = 11 : i64} {
  func.func @_fused_kernel(%arg0: i32, %arg1: memref<8x32xf32, #tpu.memory_space<vmem>>, %arg2: memref<32x128xbf16, #tpu.memory_space<vmem>>, %arg3: memref<1x128xf32, #tpu.memory_space<vmem>>, %arg4: memref<8x128xf32, #tpu.memory_space<vmem>>) attributes {dimension_semantics = [#tpu.dimension_semantics<parallel>], iteration_bounds = array<i64: 1>, scalar_prefetch = 0 : i64, scratch_operands = 0 : i64, tpu.core_type = #tpu.core_type<tc>, window_params = [{transform_indices = @transform_0, window_bounds = array<i64: 8, 32>}, {pipeline_mode = #tpu.pipeline_mode<synchronous>, transform_indices = @transform_1, window_bounds = array<i64: 32, 128>}, {pipeline_mode = #tpu.pipeline_mode<synchronous>, transform_indices = @transform_2, window_bounds = array<i64: 1, 128>}, {transform_indices = @transform_3, window_bounds = array<i64: 8, 128>}]} {
    %c0 = arith.constant 0 : index
    %c0_0 = arith.constant 0 : index
    %0 = vector.load %arg1[%c0, %c0_0] : memref<8x32xf32, #tpu.memory_space<vmem>>, vector<8x32xf32>
    %1 = arith.truncf %0 : vector<8x32xf32> to vector<8x32xbf16>
    %c0_1 = arith.constant 0 : index
    %c0_2 = arith.constant 0 : index
    %2 = vector.load %arg2[%c0_1, %c0_2] : memref<32x128xbf16, #tpu.memory_space<vmem>>, vector<32x128xbf16>
    %cst = arith.constant dense<0.000000e+00> : vector<8x128xf32>
    %3 = tpu.matmul %1, %2, %cst {dimension_numbers = #tpu.dot_dimension_numbers<[1], [0], [0], [1], [0, 0, 1, 1], [], []>} : vector<8x32xbf16>, vector<32x128xbf16>, vector<8x128xf32> -> vector<8x128xf32>
    %c0_3 = arith.constant 0 : index
    %c0_4 = arith.constant 0 : index
    %4 = vector.load %arg3[%c0_3, %c0_4] : memref<1x128xf32, #tpu.memory_space<vmem>>, vector<1x128xf32>
    %5 = vector.broadcast %4 : vector<1x128xf32> to vector<8x128xf32>
    %6 = arith.addf %3, %5 : vector<8x128xf32>
    %cst_5 = arith.constant dense<0xFF800000> : vector<8xf32>
    %7 = vector.multi_reduction <maximumf>, %6, %cst_5 [1] : vector<8x128xf32> to vector<8xf32>
    %8 = vector.shape_cast %7 : vector<8xf32> to vector<8x1xf32>
    %9 = vector.broadcast %8 : vector<8x1xf32> to vector<8x128xf32>
    %10 = arith.subf %6, %9 : vector<8x128xf32>
    %11 = math.exp %10 : vector<8x128xf32>
    %cst_6 = arith.constant dense<0.000000e+00> : vector<8xf32>
    %12 = vector.multi_reduction <add>, %11, %cst_6 [1] : vector<8x128xf32> to vector<8xf32>
    %13 = vector.shape_cast %12 : vector<8xf32> to vector<8x1xf32>
    %14 = math.log %13 : vector<8x1xf32>
    %15 = arith.addf %8, %14 : vector<8x1xf32>
    %16 = vector.broadcast %15 : vector<8x1xf32> to vector<8x128xf32>
    %17 = arith.subf %6, %16 : vector<8x128xf32>
    %c0_7 = arith.constant 0 : index
    %c0_8 = arith.constant 0 : index
    %18 = vector.load %arg4[%c0_7, %c0_8] : memref<8x128xf32, #tpu.memory_space<vmem>>, vector<8x128xf32>
    tpu.vector_store %arg4[%c0_7, %c0_8], %17 {strides = array<i32>} : memref<8x128xf32, #tpu.memory_space<vmem>>, vector<8x128xf32>,
    return
  }
  func.func @transform_0(%arg0: i32) -> (i32, i32) {
    %c0_i32 = arith.constant 0 : i32
    %c0_i32_0 = arith.constant 0 : i32
    return %arg0, %c0_i32 : i32, i32
  }
  func.func @transform_1(%arg0: i32) -> (i32, i32) {
    %c0_i32 = arith.constant 0 : i32
    %c0_i32_0 = arith.constant 0 : i32
    %c0_i32_1 = arith.constant 0 : i32
    return %c0_i32, %c0_i32_0 : i32, i32
  }
  func.func @transform_2(%arg0: i32) -> (i32, i32) {
    %c0_i32 = arith.constant 0 : i32
    %c0_i32_0 = arith.constant 0 : i32
    %c0_i32_1 = arith.constant 0 : i32
    return %c0_i32, %c0_i32_0 : i32, i32
  }
  func.func @transform_3(%arg0: i32) -> (i32, i32) {
    %c0_i32 = arith.constant 0 : i32
    %c0_i32_0 = arith.constant 0 : i32
    return %arg0, %c0_i32 : i32, i32
  }
}

module attributes {stable_mosaic.version = 11 : i64} {
  func.func @_fused_kernel(%arg0: i32, %arg1: memref<8x32xf32, #tpu.memory_space<vmem>>, %arg2: memref<32x128xbf16, #tpu.memory_space<vmem>>, %arg3: memref<1x128xf32, #tpu.memory_space<vmem>>, %arg4: memref<8x128xf32, #tpu.memory_space<vmem>>) attributes {dimension_semantics = [#tpu.dimension_semantics<parallel>], iteration_bounds = array<i64: 1>, scalar_prefetch = 0 : i64, scratch_operands = 0 : i64, tpu.core_type = #tpu.core_type<tc>, window_params = [{transform_indices = @transform_0, window_bounds = array<i64: 8, 32>}, {pipeline_mode = #tpu.pipeline_mode<synchronous>, transform_indices = @transform_1, window_bounds = array<i64: 32, 128>}, {pipeline_mode = #tpu.pipeline_mode<synchronous>, transform_indices = @transform_2, window_bounds = array<i64: 1, 128>}, {transform_indices = @transform_3, window_bounds = array<i64: 8, 128>}]} {
    %c0 = arith.constant 0 : index
    %c0_0 = arith.constant 0 : index
    %0 = vector.load %arg1[%c0, %c0_0] : memref<8x32xf32, #tpu.memory_space<vmem>>, vector<8x32xf32>
    %1 = arith.truncf %0 : vector<8x32xf32> to vector<8x32xbf16>
    %c0_1 = arith.constant 0 : index
    %c0_2 = arith.constant 0 : index
    %2 = vector.load %arg2[%c0_1, %c0_2] : memref<32x128xbf16, #tpu.memory_space<vmem>>, vector<32x128xbf16>
    %cst = arith.constant dense<0.000000e+00> : vector<8x128xf32>
    %3 = tpu.matmul %1, %2, %cst {dimension_numbers = #tpu.dot_dimension_numbers<[1], [0], [0], [1], [0, 0, 1, 1], [], []>} : vector<8x32xbf16>, vector<32x128xbf16>, vector<8x128xf32> -> vector<8x128xf32>
    %c0_3 = arith.constant 0 : index
    %c0_4 = arith.constant 0 : index
    %4 = vector.load %arg3[%c0_3, %c0_4] : memref<1x128xf32, #tpu.memory_space<vmem>>, vector<1x128xf32>
    %5 = vector.broadcast %4 : vector<1x128xf32> to vector<8x128xf32>
    %6 = arith.addf %3, %5 : vector<8x128xf32>
    %cst_5 = arith.constant dense<0xFF800000> : vector<8xf32>
    %7 = vector.multi_reduction <maximumf>, %6, %cst_5 [1] : vector<8x128xf32> to vector<8xf32>
    %8 = vector.shape_cast %7 : vector<8xf32> to vector<8x1xf32>
    %9 = vector.broadcast %8 : vector<8x1xf32> to vector<8x128xf32>
    %10 = arith.subf %6, %9 : vector<8x128xf32>
    %11 = math.exp %10 : vector<8x128xf32>
    %cst_6 = arith.constant dense<0.000000e+00> : vector<8xf32>
    %12 = vector.multi_reduction <add>, %11, %cst_6 [1] : vector<8x128xf32> to vector<8xf32>
    %13 = vector.shape_cast %12 : vector<8xf32> to vector<8x1xf32>
    %14 = math.log %13 : vector<8x1xf32>
    %15 = arith.addf %8, %14 : vector<8x1xf32>
    %16 = vector.broadcast %15 : vector<8x1xf32> to vector<8x128xf32>
    %17 = arith.subf %6, %16 : vector<8x128xf32>
    %c0_7 = arith.constant 0 : index
    %c0_8 = arith.constant 0 : index
    %18 = vector.load %arg4[%c0_7, %c0_8] : memref<8x128xf32, #tpu.memory_space<vmem>>, vector<8x128xf32>
    tpu.vector_store %arg4[%c0_7, %c0_8], %17 {strides = array<i32>} : memref<8x128xf32, #tpu.memory_space<vmem>>, vector<8x128xf32>,
    return
  }
  func.func @transform_0(%arg0: i32) -> (i32, i32) {
    %c0_i32 = arith.constant 0 : i32
    %c0_i32_0 = arith.constant 0 : i32
    return %arg0, %c0_i32 : i32, i32
  }
  func.func @transform_1(%arg0: i32) -> (i32, i32) {
    %c0_i32 = arith.constant 0 : i32
    %c0_i32_0 = arith.constant 0 : i32
    %c0_i32_1 = arith.constant 0 : i32
    return %c0_i32, %c0_i32_0 : i32, i32
  }
  func.func @transform_2(%arg0: i32) -> (i32, i32) {
    %c0_i32 = arith.constant 0 : i32
    %c0_i32_0 = arith.constant 0 : i32
    %c0_i32_1 = arith.constant 0 : i32
    return %c0_i32, %c0_i32_0 : i32, i32
  }
  func.func @transform_3(%arg0: i32) -> (i32, i32) {
    %c0_i32 = arith.constant 0 : i32
    %c0_i32_0 = arith.constant 0 : i32
    return %arg0, %c0_i32 : i32, i32
  }
}

</mosaic_0001>

<llo_original>
// kernel: tpu_custom_call.1
$region0: #{tpu_custom_call.1}
  #allocation0 [shape = 'u32[]', space=smem, size = 0x4, offset = 0x4, fixed_abs, tag = 'smem constant byte address 0x4 - core index']
  #allocation1 [shape = 'u32[72,128]{1,0:T(1,128)}', space=vmem, size = 0x9000, scoped, tag = 'internal scratch']
  %s0 = inlined_call_operand.hbm [shape: f32[8,32], index: 0, kind: input, shape index: {}]
  %s1 = inlined_call_operand.hbm [shape: bf16[32,128], index: 1, kind: input, shape index: {}]
  %s2 = inlined_call_operand.vmem [shape: f32[1,128], index: 2, kind: input, shape index: {}]
  %s3 = inlined_call_operand.hbm [shape: f32[8,128], index: 3, kind: output, shape index: {}]
  %s4 = sld [smem:[#allocation0]]
  $region30: #{tpu_custom_call.1} parent=0
    _
  %s6 = ssub.s32 1, %s4
  %s7 = scalar_select 0, %s6, %s4
  $region1: #{tpu_custom_call.1} parent=0
    #allocation2 [shape = 'u8[4096]{0}', space=vmem, size = 0x1000, scoped, tag = 'input window, operand 0, single buffered']
    #allocation3 [shape = 's32[1]{0}', space=sflag, size = 0x4, scoped, tag = 'scoped memory for tpu_custom_call.1']
    #allocation4 [shape = 's32[1]{0}', space=sflag, size = 0x4, scoped, tag = 'scoped memory for tpu_custom_call.1']
    #allocation5 [shape = 'u8[8192]{0}', space=vmem, size = 0x2000, scoped, tag = 'input window, operand 1, single buffered']
    #allocation6 [shape = 's32[1]{0}', space=sflag, size = 0x4, scoped, tag = 'scoped memory for tpu_custom_call.1']
    #allocation7 [shape = 'u8[4096]{0}', space=vmem, size = 0x1000, scoped, tag = 'output window, operand 0, single buffered']
    %8 = vsyncpa [#allocation3], 0
    %9 = vsyncpa [#allocation6], 0
    %10 = vsyncpa [#allocation4], 0
    // Predicated region
    $region2: #{tpu_custom_call.1} parent=1 // pred_check
      _
    $region3: #{tpu_custom_call.1} parent=1 // pred_check_branch
      %12 = sbr.rel (0) target = $region5
    $region4: #{tpu_custom_call.1} parent=1 // pred_region
      %14 = vsyncadd [#allocation3], 0
      %s16 = sshll.u32 %s0, 4
      %s17 = int_to_ptr.hbm [resolvable:$true] %s16
      %s18 = sshll.u32 [#allocation2], 4
      %s19 = int_to_ptr.vmem [resolvable:$true] %s18
      %21 = dma.hbm_to_vmem [thread:$0]  %s17, 128, %s19, [#allocation3]
    $region5: #{tpu_custom_call.1} parent=1 // pred_fallthru
      _
    // Predicated region
    $region6: #{tpu_custom_call.1} parent=1 // pred_check
      _
    $region7: #{tpu_custom_call.1} parent=1 // pred_check_branch
      %23 = sbr.rel (0) target = $region9
    $region8: #{tpu_custom_call.1} parent=1 // pred_region
      %25 = vsyncadd [#allocation6], 0
      %s26 = sshll.u32 %s1, 4
      %s27 = int_to_ptr.hbm [resolvable:$true] %s26
      %s28 = sshll.u32 [#allocation5], 4
      %s29 = int_to_ptr.vmem [resolvable:$true] %s28
      %34 = dma.hbm_to_vmem [thread:$0]  %s27, 256, %s29, [#allocation6], 64, 64, 4
    $region9: #{tpu_custom_call.1} parent=1 // pred_fallthru
      _
    // Predicated region
    $region10: #{tpu_custom_call.1} parent=1 // pred_check
      _
    $region11: #{tpu_custom_call.1} parent=1 // pred_check_branch
      %36 = sbr.rel (0) target = $region13
    $region12: #{tpu_custom_call.1} parent=1 // pred_region
      _
    $region13: #{tpu_custom_call.1} parent=1 // pred_fallthru
      _
    // Predicated region
    $region14: #{tpu_custom_call.1} parent=1 // pred_check
      _
    $region15: #{tpu_custom_call.1} parent=1 // pred_check_branch
      %38 = sbr.rel (0) target = $region17
    $region16: #{tpu_custom_call.1} parent=1 // pred_region
      %40 = dma.done [#allocation3], 128
    $region17: #{tpu_custom_call.1} parent=1 // pred_fallthru
      _
    // Predicated region
    $region18: #{tpu_custom_call.1} parent=1 // pred_check
      _
    $region19: #{tpu_custom_call.1} parent=1 // pred_check_branch
      %42 = sbr.rel (0) target = $region21
    $region20: #{tpu_custom_call.1} parent=1 // pred_region
      %44 = dma.done [#allocation6], 256
    $region21: #{tpu_custom_call.1} parent=1 // pred_fallthru
      _
    %v46 = vld [vmem:[#allocation2] sm:$0xff]
    %v47 = vpack.c.bf16 %v46, %v46
    %v48 = vld [vmem:[#allocation5] sm:$0xf]
    %v49 = vld [vmem:[#allocation5 + $0x4] sm:$0xf]
    %v50 = vld [vmem:[#allocation5 + $0x8] sm:$0xf]
    %v51 = vld [vmem:[#allocation5 + $0xc] sm:$0xf]
    %v52 = vld [vmem:[%s2] sm:$0x1]
    %v54 = vperm.slane %v52, 0
    %v60 = vunpack.c.l.b16 %v48
    %v61 = vunpack.c.l.b16 %v49
    %v62 = vunpack.c.l.b16 %v50
    %v63 = vunpack.c.l.b16 %v51
    %v64 = vpack.c.b16 %v61, %v60
    %v65 = vpack.c.b16 %v63, %v62
    %vm68 = vcmask 261120
    %v70 = vsel %vm68, %v47, 0
    %72 = vmatpush.bf16.msra.mxu0 0
    %73 = vmatpush.bf16.msra.mxu0 0
    %74 = vmatpush.bf16.msra.mxu0 0
    %75 = vmatpush.bf16.msra.mxu0 0
    %76 = vmatpush.bf16.msra.mxu0 0
    %77 = vmatpush.bf16.msra.mxu0 0
    %78 = vmatpush.bf16.msra.mxu0 %v65
    %79 = vmatpush.bf16.msra.mxu0 %v64
    %80 = vmatmul.bf16.gmra.mxu0 %v70
    %v81 = vpop.f32.mrf.mxu0
    %v82 = vadd.f32 %v54, %v81
    %v83 = vpop.f32.mrf.mxu0
    %84 = vdwg.mxu0
    %85 = vmax.xlane.f32.xlu0 %v82
    %v86 = vpop.xlane.xlu0 %85
    %v87 = vsub.f32 %v82, %v86
    %v88 = vmul.f32 %v87, 1.442695
    %v89 = vpow.pop %v88
    %90 = vadd.xlane.f32.xlu0 %v89
    %v91 = vpop.xlane.xlu0 %90
    %v92 = vlog2.pop %v91
    %v93 = vmul.f32 %v92, 0.6931472
    %v94 = vadd.f32 %v86, %v93
    %v95 = vsub.f32 %v82, %v94
    %96 = vst [vmem:[#allocation7] sm:$0xff] %v95
    // Predicated region
    $region22: #{tpu_custom_call.1} parent=1 // pred_check
      _
    $region23: #{tpu_custom_call.1} parent=1 // pred_check_branch
      %98 = sbr.rel (0) target = $region25
    $region24: #{tpu_custom_call.1} parent=1 // pred_region
      %100 = vsyncadd [#allocation4], 0
      %s102 = sshll.u32 [#allocation7], 4
      %s103 = int_to_ptr.vmem [resolvable:$true] %s102
      %s104 = sshll.u32 %s3, 4
      %s105 = int_to_ptr.hbm [resolvable:$true] %s104
      %107 = dma.vmem_to_hbm [thread:$0]  %s103, 128, %s105, [#allocation4]
    $region25: #{tpu_custom_call.1} parent=1 // pred_fallthru
      _
    // Predicated region
    $region26: #{tpu_custom_call.1} parent=1 // pred_check
      _
    $region27: #{tpu_custom_call.1} parent=1 // pred_check_branch
      %109 = sbr.rel (0) target = $region29
    $region28: #{tpu_custom_call.1} parent=1 // pred_region
      %111 = dma.done [#allocation4], 128
    $region29: #{tpu_custom_call.1} parent=1 // pred_fallthru
      _
    %112 = vsyncpa [#allocation3], 1
    %113 = vsyncpa [#allocation6], 1
    %114 = vsyncpa [#allocation4], 1

// kernel: tpu_custom_call.1
$region0: #{tpu_custom_call.1}
  #allocation0 [shape = 'u32[]', space=smem, size = 0x4, offset = 0x4, fixed_abs, tag = 'smem constant byte address 0x4 - core index']
  #allocation1 [shape = 'u32[72,128]{1,0:T(1,128)}', space=vmem, size = 0x9000, scoped, tag = 'internal scratch']
  %s0 = inlined_call_operand.hbm [shape: f32[8,32], index: 0, kind: input, shape index: {}]
  %s1 = inlined_call_operand.hbm [shape: bf16[32,128], index: 1, kind: input, shape index: {}]
  %s2 = inlined_call_operand.vmem [shape: f32[1,128], index: 2, kind: input, shape index: {}]
  %s3 = inlined_call_operand.hbm [shape: f32[8,128], index: 3, kind: output, shape index: {}]
  %s4 = sld [smem:[#allocation0]]
  $region30: #{tpu_custom_call.1} parent=0
    _
  %s6 = ssub.s32 1, %s4
  %s7 = scalar_select 0, %s6, %s4
  $region1: #{tpu_custom_call.1} parent=0
    #allocation2 [shape = 'u8[4096]{0}', space=vmem, size = 0x1000, scoped, tag = 'input window, operand 0, single buffered']
    #allocation3 [shape = 's32[1]{0}', space=sflag, size = 0x4, scoped, tag = 'scoped memory for tpu_custom_call.1']
    #allocation4 [shape = 's32[1]{0}', space=sflag, size = 0x4, scoped, tag = 'scoped memory for tpu_custom_call.1']
    #allocation5 [shape = 'u8[8192]{0}', space=vmem, size = 0x2000, scoped, tag = 'input window, operand 1, single buffered']
    #allocation6 [shape = 's32[1]{0}', space=sflag, size = 0x4, scoped, tag = 'scoped memory for tpu_custom_call.1']
    #allocation7 [shape = 'u8[4096]{0}', space=vmem, size = 0x1000, scoped, tag = 'output window, operand 0, single buffered']
    %8 = vsyncpa [#allocation3], 0
    %9 = vsyncpa [#allocation6], 0
    %10 = vsyncpa [#allocation4], 0
    // Predicated region
    $region2: #{tpu_custom_call.1} parent=1 // pred_check
      _
    $region3: #{tpu_custom_call.1} parent=1 // pred_check_branch
      %12 = sbr.rel (0) target = $region5
    $region4: #{tpu_custom_call.1} parent=1 // pred_region
      %14 = vsyncadd [#allocation3], 0
      %s16 = sshll.u32 %s0, 4
      %s17 = int_to_ptr.hbm [resolvable:$true] %s16
      %s18 = sshll.u32 [#allocation2], 4
      %s19 = int_to_ptr.vmem [resolvable:$true] %s18
      %21 = dma.hbm_to_vmem [thread:$0]  %s17, 128, %s19, [#allocation3]
    $region5: #{tpu_custom_call.1} parent=1 // pred_fallthru
      _
    // Predicated region
    $region6: #{tpu_custom_call.1} parent=1 // pred_check
      _
    $region7: #{tpu_custom_call.1} parent=1 // pred_check_branch
      %23 = sbr.rel (0) target = $region9
    $region8: #{tpu_custom_call.1} parent=1 // pred_region
      %25 = vsyncadd [#allocation6], 0
      %s26 = sshll.u32 %s1, 4
      %s27 = int_to_ptr.hbm [resolvable:$true] %s26
      %s28 = sshll.u32 [#allocation5], 4
      %s29 = int_to_ptr.vmem [resolvable:$true] %s28
      %34 = dma.hbm_to_vmem [thread:$0]  %s27, 256, %s29, [#allocation6], 64, 64, 4
    $region9: #{tpu_custom_call.1} parent=1 // pred_fallthru
      _
    // Predicated region
    $region10: #{tpu_custom_call.1} parent=1 // pred_check
      _
    $region11: #{tpu_custom_call.1} parent=1 // pred_check_branch
      %36 = sbr.rel (0) target = $region13
    $region12: #{tpu_custom_call.1} parent=1 // pred_region
      _
    $region13: #{tpu_custom_call.1} parent=1 // pred_fallthru
      _
    // Predicated region
    $region14: #{tpu_custom_call.1} parent=1 // pred_check
      _
    $region15: #{tpu_custom_call.1} parent=1 // pred_check_branch
      %38 = sbr.rel (0) target = $region17
    $region16: #{tpu_custom_call.1} parent=1 // pred_region
      %40 = dma.done [#allocation3], 128
    $region17: #{tpu_custom_call.1} parent=1 // pred_fallthru
      _
    // Predicated region
    $region18: #{tpu_custom_call.1} parent=1 // pred_check
      _
    $region19: #{tpu_custom_call.1} parent=1 // pred_check_branch
      %42 = sbr.rel (0) target = $region21
    $region20: #{tpu_custom_call.1} parent=1 // pred_region
      %44 = dma.done [#allocation6], 256
    $region21: #{tpu_custom_call.1} parent=1 // pred_fallthru
      _
    %v46 = vld [vmem:[#allocation2] sm:$0xff]
    %v47 = vpack.c.bf16 %v46, %v46
    %v48 = vld [vmem:[#allocation5] sm:$0xf]
    %v49 = vld [vmem:[#allocation5 + $0x4] sm:$0xf]
    %v50 = vld [vmem:[#allocation5 + $0x8] sm:$0xf]
    %v51 = vld [vmem:[#allocation5 + $0xc] sm:$0xf]
    %v52 = vld [vmem:[%s2] sm:$0x1]
    %v54 = vperm.slane %v52, 0
    %v60 = vunpack.c.l.b16 %v48
    %v61 = vunpack.c.l.b16 %v49
    %v62 = vunpack.c.l.b16 %v50
    %v63 = vunpack.c.l.b16 %v51
    %v64 = vpack.c.b16 %v61, %v60
    %v65 = vpack.c.b16 %v63, %v62
    %vm68 = vcmask 261120
    %v70 = vsel %vm68, %v47, 0
    %72 = vmatpush.bf16.msra.mxu0 0
    %73 = vmatpush.bf16.msra.mxu0 0
    %74 = vmatpush.bf16.msra.mxu0 0
    %75 = vmatpush.bf16.msra.mxu0 0
    %76 = vmatpush.bf16.msra.mxu0 0
    %77 = vmatpush.bf16.msra.mxu0 0
    %78 = vmatpush.bf16.msra.mxu0 %v65
    %79 = vmatpush.bf16.msra.mxu0 %v64
    %80 = vmatmul.bf16.gmra.mxu0 %v70
    %v81 = vpop.f32.mrf.mxu0
    %v82 = vadd.f32 %v54, %v81
    %v83 = vpop.f32.mrf.mxu0
    %84 = vdwg.mxu0
    %85 = vmax.xlane.f32.xlu0 %v82
    %v86 = vpop.xlane.xlu0 %85
    %v87 = vsub.f32 %v82, %v86
    %v88 = vmul.f32 %v87, 1.442695
    %v89 = vpow.pop %v88
    %90 = vadd.xlane.f32.xlu0 %v89
    %v91 = vpop.xlane.xlu0 %90
    %v92 = vlog2.pop %v91
    %v93 = vmul.f32 %v92, 0.6931472
    %v94 = vadd.f32 %v86, %v93
    %v95 = vsub.f32 %v82, %v94
    %96 = vst [vmem:[#allocation7] sm:$0xff] %v95
    // Predicated region
    $region22: #{tpu_custom_call.1} parent=1 // pred_check
      _
    $region23: #{tpu_custom_call.1} parent=1 // pred_check_branch
      %98 = sbr.rel (0) target = $region25
    $region24: #{tpu_custom_call.1} parent=1 // pred_region
      %100 = vsyncadd [#allocation4], 0
      %s102 = sshll.u32 [#allocation7], 4
      %s103 = int_to_ptr.vmem [resolvable:$true] %s102
      %s104 = sshll.u32 %s3, 4
      %s105 = int_to_ptr.hbm [resolvable:$true] %s104
      %107 = dma.vmem_to_hbm [thread:$0]  %s103, 128, %s105, [#allocation4]
    $region25: #{tpu_custom_call.1} parent=1 // pred_fallthru
      _
    // Predicated region
    $region26: #{tpu_custom_call.1} parent=1 // pred_check
      _
    $region27: #{tpu_custom_call.1} parent=1 // pred_check_branch
      %109 = sbr.rel (0) target = $region29
    $region28: #{tpu_custom_call.1} parent=1 // pred_region
      %111 = dma.done [#allocation4], 128
    $region29: #{tpu_custom_call.1} parent=1 // pred_fallthru
      _
    %112 = vsyncpa [#allocation3], 1
    %113 = vsyncpa [#allocation6], 1
    %114 = vsyncpa [#allocation4], 1

</llo_original>
